<compile_context>
chip_gen: v5e
topology: v5e:2x2
jax: 0.10.0
libtpu: 0.0.40
codegen_flags: <defaults>
</compile_context>

<pallas_src>
import functools

import jax
import jax.numpy as jnp
from jax.experimental import pallas as pl
from jax.experimental.pallas import tpu as pltpu

_MiB = 1024 * 1024


def _round_up(x: int, m: int) -> int:
    return ((x + m - 1) // m) * m


@functools.lru_cache(maxsize=1)
def _vmem_capacity_bytes() -> int:
    """Physical VMEM per TensorCore; falls back to 128 MiB (v5e/v6e)."""
    try:
        return int(pltpu.get_tpu_info().vmem_capacity_bytes)
    except Exception:
        return 128 * _MiB


def _vmem_estimate(tm, ti, H, x_bytes, w_bytes, o_bytes, use_scratch):
    est = 2 * (tm * H * x_bytes          # x tile (double-buffered)
               + H * ti * w_bytes        # W_up_t tile
               + ti * H * w_bytes        # W_down_t tile
               + (ti + H) * 4)           # f32 biases
    est += 2 * tm * H * o_bytes          # output tile (double-buffered)
    if use_scratch:
        est += tm * H * 4                # f32 accumulator scratch
    return est


def _mlp_kernel_f32out(x_ref, wup_ref, bup_ref, wdn_ref, bdn_ref, o_ref):
    """f32 output: accumulate directly into the VMEM-resident output block."""
    k = pl.program_id(1)

    @pl.when(k == 0)
    def _():
        o_ref[...] = jnp.zeros_like(o_ref)

    # Up projection for this intermediate tile: (TM, H) @ (H, TI) -> (TM, TI)
    h = jnp.dot(x_ref[...], wup_ref[...], preferred_element_type=jnp.float32)
    h = h + bup_ref[...]                       # f32 bias, broadcasts over rows
    a = h * jax.nn.sigmoid(h)                  # SiLU in f32 (EUP sigmoid)

    # Partial down projection: (TM, TI) @ (TI, H) -> (TM, H), f32 accumulation.
    o_ref[...] += jnp.dot(a.astype(wdn_ref.dtype), wdn_ref[...],
                          preferred_element_type=jnp.float32)

    @pl.when(k == pl.num_programs(1) - 1)
    def _():
        o_ref[...] += bdn_ref[...]


def _mlp_kernel_acc(x_ref, wup_ref, bup_ref, wdn_ref, bdn_ref, o_ref, acc_ref):
    """Non-f32 output: f32 scratch accumulator, single cast on the last step."""
    k = pl.program_id(1)

    @pl.when(k == 0)
    def _():
        acc_ref[...] = jnp.zeros_like(acc_ref)

    h = jnp.dot(x_ref[...], wup_ref[...], preferred_element_type=jnp.float32)
    h = h + bup_ref[...]
    a = h * jax.nn.sigmoid(h)
    acc_ref[...] += jnp.dot(a.astype(wdn_ref.dtype), wdn_ref[...],
                            preferred_element_type=jnp.float32)

    @pl.when(k == pl.num_programs(1) - 1)
    def _():
        o_ref[...] = (acc_ref[...] + bdn_ref[...]).astype(o_ref.dtype)


@functools.partial(jax.jit, static_argnames=("tm", "ti", "use_bf16_compute"))
def mlp_pallas(x, w_up_t, b_up, w_down_t, b_down, *, tm=None, ti=None,
               use_bf16_compute=False):
    T, H = x.shape
    H2, I = w_up_t.shape
    assert H == H2
    assert w_down_t.shape == (I, H)
    assert H % 128 == 0, "hidden_size must be a multiple of 128"

    out_dtype = x.dtype
    use_scratch = out_dtype != jnp.float32

    # Optional bf16 compute path (MXU-native on v6e/v7x); accumulation stays f32.
    x_in = x
    w_up_in, w_down_in = w_up_t, w_down_t
    if use_bf16_compute:
        x_in = x_in.astype(jnp.bfloat16)
        w_up_in = w_up_in.astype(jnp.bfloat16)
        w_down_in = w_down_in.astype(jnp.bfloat16)

    x_bytes = jnp.dtype(x_in.dtype).itemsize
    w_bytes = jnp.dtype(w_up_in.dtype).itemsize
    o_bytes = jnp.dtype(out_dtype).itemsize

    # Sublane-packing granularity for the token dim (8 f32 / 16 bf16 / 32 int8).
    pack = 8 * max(1, 4 // x_bytes)

    # ---- generation-aware VMEM budget --------------------------------------
    vmem_budget = max(32 * _MiB, _vmem_capacity_bytes() - 16 * _MiB)

    # ---- tile selection -----------------------------------------------------
    base_tm = tm if tm is not None else (512 if w_bytes <= 2 else 256)
    base_ti = ti if ti is not None else (1024 if w_bytes <= 2 else 512)

    tm_eff = min(_round_up(base_tm, pack), _round_up(T, pack))
    ti_eff = min(_round_up(base_ti, 128), _round_up(I, 128))

    # Shrink tiles (ti first, then tm) until the footprint fits physical VMEM.
    while _vmem_estimate(tm_eff, ti_eff, H, x_bytes, w_bytes, o_bytes,
                         use_scratch) > vmem_budget:
        if ti_eff > 256:
            ti_eff = max(128, ((ti_eff // 2) // 128) * 128)
        elif tm_eff > pack:
            tm_eff = max(pack, ((tm_eff // 2) // pack) * pack)
        else:
            break

    # ---- pad token and intermediate dims to the tile sizes -----------------
    T_pad = _round_up(T, tm_eff)
    I_pad = _round_up(I, ti_eff)

    if T_pad != T:
        x_in = jnp.pad(x_in, ((0, T_pad - T), (0, 0)))

    b_up_f32 = b_up.reshape(1, -1).astype(jnp.float32)
    b_down_f32 = b_down.reshape(1, -1).astype(jnp.float32)
    if I_pad != I:
        # Zero-padded intermediate columns contribute silu(0) @ 0 == 0.
        w_up_in = jnp.pad(w_up_in, ((0, 0), (0, I_pad - I)))
        w_down_in = jnp.pad(w_down_in, ((0, I_pad - I), (0, 0)))
        b_up_f32 = jnp.pad(b_up_f32, ((0, 0), (0, I_pad - I)))

    est = _vmem_estimate(tm_eff, ti_eff, H, x_bytes, w_bytes, o_bytes,
                         use_scratch)
    vmem_limit = max(32 * _MiB, min(vmem_budget, int(est * 1.3) + 2 * _MiB))

    # ---- cost estimate (weights streamed once per token tile) --------------
    n_token_tiles = T_pad // tm_eff
    cost = pl.CostEstimate(
        flops=4 * T_pad * H * I_pad,             # two matmuls, 2 flops/MAC
        transcendentals=T_pad * I_pad,           # sigmoid
        bytes_accessed=(T_pad * H * x_bytes
                        + n_token_tiles * (H * I_pad + I_pad * H) * w_bytes
                        + (I_pad + H) * 4
                        + T_pad * H * o_bytes),
    )

    grid = (T_pad // tm_eff, I_pad // ti_eff)
    in_specs = [
        pl.BlockSpec((tm_eff, H), lambda i, k: (i, 0)),    # x tile
        pl.BlockSpec((H, ti_eff), lambda i, k: (0, k)),    # W_up_t tile
        pl.BlockSpec((1, ti_eff), lambda i, k: (0, k)),    # b_up tile (f32)
        pl.BlockSpec((ti_eff, H), lambda i, k: (k, 0)),    # W_down_t tile
        pl.BlockSpec((1, H), lambda i, k: (0, 0)),         # b_down (f32)
    ]
    out_spec = pl.BlockSpec((tm_eff, H), lambda i, k: (i, 0))

    kernel = _mlp_kernel_acc if use_scratch else _mlp_kernel_f32out
    scratch = [pltpu.VMEM((tm_eff, H), jnp.float32)] if use_scratch else []

    out = pl.pallas_call(
        kernel,
        out_shape=jax.ShapeDtypeStruct((T_pad, H), out_dtype),
        grid_spec=pltpu.PrefetchScalarGridSpec(
            num_scalar_prefetch=0,
            grid=grid,
            in_specs=in_specs,
            out_specs=out_spec,
            scratch_shapes=scratch,
        ),
        compiler_params=pltpu.CompilerParams(
            dimension_semantics=("parallel", "arbitrary"),
            vmem_limit_bytes=vmem_limit,
        ),
        cost_estimate=cost,
    )(x_in, w_up_in, b_up_f32, w_down_in, b_down_f32)

    return out[:T] if T_pad != T else out


def mlp_reference(x, w_up_t, b_up, w_down_t, b_down):
    h = (x.astype(jnp.float32) @ w_up_t.astype(jnp.float32)
         + b_up.reshape(1, -1).astype(jnp.float32))
    a = h * jax.nn.sigmoid(h)
    return (a @ w_down_t.astype(jnp.float32)
            + b_down.reshape(1, -1).astype(jnp.float32))


if __name__ == "__main__":
    hidden_size = 256
    intermediate_size = 512

    key = jax.random.PRNGKey(0)
    kx, k1, k2, k3, k4 = jax.random.split(key, 5)

    # Synthetic Linear(H, I) / Linear(I, H) params, stored pre-transposed.
    w_up_t = (jax.random.normal(k1, (hidden_size, intermediate_size), jnp.float32)
              * (1.0 / hidden_size ** 0.5))
    b_up = jax.random.normal(k2, (1, intermediate_size), jnp.float32) * 0.01
    w_down_t = (jax.random.normal(k3, (intermediate_size, hidden_size), jnp.float32)
                * (1.0 / intermediate_size ** 0.5))
    b_down = jax.random.normal(k4, (1, hidden_size), jnp.float32) * 0.01

    # --- test 1: f32, tiny token count (tiles adapt down, grid (1,1),
    #             direct-into-output accumulation path) ----------------------
    tokens = 8
    x = jax.random.normal(kx, (tokens, hidden_size), jnp.float32)
    out = jax.block_until_ready(mlp_pallas(x, w_up_t, b_up, w_down_t, b_down))
    ref = mlp_reference(x, w_up_t, b_up, w_down_t, b_down).astype(x.dtype)
    assert out.shape == (tokens, hidden_size)
    assert jnp.allclose(out, ref, atol=1e-4, rtol=1e-4), "f32 mismatch vs reference"

    # --- test 2: bf16 weights/activations, non-tile-multiple token count
    #             (token padding path + f32 scratch accumulator) -------------
    tokens2 = 100
    x2 = jax.random.normal(kx, (tokens2, hidden_size), jnp.float32).astype(jnp.bfloat16)
    out2 = jax.block_until_ready(
        mlp_pallas(x2, w_up_t.astype(jnp.bfloat16), b_up.astype(jnp.bfloat16),
                   w_down_t.astype(jnp.bfloat16), b_down.astype(jnp.bfloat16))
    )
    ref2 = mlp_reference(x2, w_up_t.astype(jnp.bfloat16), b_up.astype(jnp.bfloat16),
                         w_down_t.astype(jnp.bfloat16), b_down.astype(jnp.bfloat16))
    assert out2.shape == (tokens2, hidden_size)
    assert out2.dtype == jnp.bfloat16
    assert jnp.allclose(out2.astype(jnp.float32), ref2, atol=5e-2, rtol=5e-2), \
        "bf16 mismatch vs reference"

    # --- test 3: f32 params with bf16 compute path (f32 accumulation/output) -
    tokens3 = 64
    x3 = jax.random.normal(kx, (tokens3, hidden_size), jnp.float32)
    out3 = jax.block_until_ready(
        mlp_pallas(x3, w_up_t, b_up, w_down_t, b_down, use_bf16_compute=True)
    )
    ref3 = mlp_reference(x3, w_up_t, b_up, w_down_t, b_down)
    assert out3.shape == (tokens3, hidden_size)
    assert out3.dtype == jnp.float32
    assert jnp.allclose(out3, ref3, atol=5e-2, rtol=5e-2), \
        "bf16-compute mismatch vs f32 reference"

    print("KERNEL_OK")
</pallas_src>

<mosaic_0001>
module attributes {stable_mosaic.version = 11 : i64} {
  func.func @_mlp_kernel_f32out(%arg0: i32, %arg1: i32, %arg2: memref<8x256xf32, #tpu.memory_space<vmem>>, %arg3: memref<256x512xf32, #tpu.memory_space<vmem>>, %arg4: memref<1x512xf32, #tpu.memory_space<vmem>>, %arg5: memref<512x256xf32, #tpu.memory_space<vmem>>, %arg6: memref<1x256xf32, #tpu.memory_space<vmem>>, %arg7: memref<8x256xf32, #tpu.memory_space<vmem>>) attributes {dimension_semantics = [#tpu.dimension_semantics<parallel>, #tpu.dimension_semantics<arbitrary>], iteration_bounds = array<i64: 1, 1>, scalar_prefetch = 0 : i64, scratch_operands = 0 : i64, tpu.core_type = #tpu.core_type<tc>, window_params = [{transform_indices = @transform_0, window_bounds = array<i64: 8, 256>}, {transform_indices = @transform_1, window_bounds = array<i64: 256, 512>}, {transform_indices = @transform_2, window_bounds = array<i64: 1, 512>}, {transform_indices = @transform_3, window_bounds = array<i64: 512, 256>}, {pipeline_mode = #tpu.pipeline_mode<synchronous>, transform_indices = @transform_4, window_bounds = array<i64: 1, 256>}, {transform_indices = @transform_5, window_bounds = array<i64: 8, 256>}]} {
    %c0_i32 = arith.constant 0 : i32
    %0 = arith.cmpi eq, %arg1, %c0_i32 : i32
    %1 = arith.extui %0 : i1 to i32
    %c0_i32_0 = arith.constant 0 : i32
    %2 = arith.cmpi ne, %1, %c0_i32_0 : i32
    scf.if %2 {
      %cst_16 = arith.constant 0.000000e+00 : f32
      %23 = vector.broadcast %cst_16 : f32 to vector<8x256xf32>
      %c0_17 = arith.constant 0 : index
      %c0_18 = arith.constant 0 : index
      %24 = vector.load %arg7[%c0_17, %c0_18] : memref<8x256xf32, #tpu.memory_space<vmem>>, vector<8x256xf32>
      tpu.vector_store %arg7[%c0_17, %c0_18], %23 {strides = array<i32>} : memref<8x256xf32, #tpu.memory_space<vmem>>, vector<8x256xf32>,
    } else {
    }
    %c0 = arith.constant 0 : index
    %c0_1 = arith.constant 0 : index
    %3 = vector.load %arg2[%c0, %c0_1] : memref<8x256xf32, #tpu.memory_space<vmem>>, vector<8x256xf32>
    %c0_2 = arith.constant 0 : index
    %c0_3 = arith.constant 0 : index
    %4 = vector.load %arg3[%c0_2, %c0_3] : memref<256x512xf32, #tpu.memory_space<vmem>>, vector<256x512xf32>
    %cst = arith.constant dense<0.000000e+00> : vector<8x512xf32>
    %5 = tpu.matmul %3, %4, %cst {dimension_numbers = #tpu.dot_dimension_numbers<[1], [0], [0], [1], [0, 0, 1, 1], [], []>} : vector<8x256xf32>, vector<256x512xf32>, vector<8x512xf32> -> vector<8x512xf32>
    %c0_4 = arith.constant 0 : index
    %c0_5 = arith.constant 0 : index
    %6 = vector.load %arg4[%c0_4, %c0_5] : memref<1x512xf32, #tpu.memory_space<vmem>>, vector<1x512xf32>
    %7 = vector.broadcast %6 : vector<1x512xf32> to vector<8x512xf32>
    %8 = arith.addf %5, %7 : vector<8x512xf32>
    %9 = arith.negf %8 : vector<8x512xf32>
    %10 = math.exp %9 : vector<8x512xf32>
    %cst_6 = arith.constant 1.000000e+00 : f32
    %11 = vector.broadcast %cst_6 : f32 to vector<8x512xf32>
    %12 = arith.addf %11, %10 : vector<8x512xf32>
    %13 = arith.divf %11, %12 : vector<8x512xf32>
    %14 = arith.mulf %8, %13 : vector<8x512xf32>
    %c0_7 = arith.constant 0 : index
    %c0_8 = arith.constant 0 : index
    %15 = vector.load %arg7[%c0_7, %c0_8] : memref<8x256xf32, #tpu.memory_space<vmem>>, vector<8x256xf32>
    %c0_9 = arith.constant 0 : index
    %c0_10 = arith.constant 0 : index
    %16 = vector.load %arg5[%c0_9, %c0_10] : memref<512x256xf32, #tpu.memory_space<vmem>>, vector<512x256xf32>
    %cst_11 = arith.constant dense<0.000000e+00> : vector<8x256xf32>
    %17 = tpu.matmul %14, %16, %cst_11 {dimension_numbers = #tpu.dot_dimension_numbers<[1], [0], [0], [1], [0, 0, 1, 1], [], []>} : vector<8x512xf32>, vector<512x256xf32>, vector<8x256xf32> -> vector<8x256xf32>
    %18 = arith.addf %15, %17 : vector<8x256xf32>
    %c0_12 = arith.constant 0 : index
    %c0_13 = arith.constant 0 : index
    %19 = vector.load %arg7[%c0_12, %c0_13] : memref<8x256xf32, #tpu.memory_space<vmem>>, vector<8x256xf32>
    tpu.vector_store %arg7[%c0_12, %c0_13], %18 {strides = array<i32>} : memref<8x256xf32, #tpu.memory_space<vmem>>, vector<8x256xf32>,
    %c0_i32_14 = arith.constant 0 : i32
    %20 = arith.cmpi eq, %arg1, %c0_i32_14 : i32
    %21 = arith.extui %20 : i1 to i32
    %c0_i32_15 = arith.constant 0 : i32
    %22 = arith.cmpi ne, %21, %c0_i32_15 : i32
    scf.if %22 {
      %c0_16 = arith.constant 0 : index
      %c0_17 = arith.constant 0 : index
      %23 = vector.load %arg7[%c0_16, %c0_17] : memref<8x256xf32, #tpu.memory_space<vmem>>, vector<8x256xf32>
      %c0_18 = arith.constant 0 : index
      %c0_19 = arith.constant 0 : index
      %24 = vector.load %arg6[%c0_18, %c0_19] : memref<1x256xf32, #tpu.memory_space<vmem>>, vector<1x256xf32>
      %25 = vector.broadcast %24 : vector<1x256xf32> to vector<8x256xf32>
      %26 = arith.addf %23, %25 : vector<8x256xf32>
      %c0_20 = arith.constant 0 : index
      %c0_21 = arith.constant 0 : index
      %27 = vector.load %arg7[%c0_20, %c0_21] : memref<8x256xf32, #tpu.memory_space<vmem>>, vector<8x256xf32>
      tpu.vector_store %arg7[%c0_20, %c0_21], %26 {strides = array<i32>} : memref<8x256xf32, #tpu.memory_space<vmem>>, vector<8x256xf32>,
    } else {
    }
    return
  }
  func.func @transform_0(%arg0: i32, %arg1: i32) -> (i32, i32) {
    %c0_i32 = arith.constant 0 : i32
    %c0_i32_0 = arith.constant 0 : i32
    return %arg0, %c0_i32 : i32, i32
  }
  func.func @transform_1(%arg0: i32, %arg1: i32) -> (i32, i32) {
    %c0_i32 = arith.constant 0 : i32
    %c0_i32_0 = arith.constant 0 : i32
    return %c0_i32, %arg1 : i32, i32
  }
  func.func @transform_2(%arg0: i32, %arg1: i32) -> (i32, i32) {
    %c0_i32 = arith.constant 0 : i32
    %c0_i32_0 = arith.constant 0 : i32
    return %c0_i32, %arg1 : i32, i32
  }
  func.func @transform_3(%arg0: i32, %arg1: i32) -> (i32, i32) {
    %c0_i32 = arith.constant 0 : i32
    %c0_i32_0 = arith.constant 0 : i32
    return %arg1, %c0_i32 : i32, i32
  }
  func.func @transform_4(%arg0: i32, %arg1: i32) -> (i32, i32) {
    %c0_i32 = arith.constant 0 : i32
    %c0_i32_0 = arith.constant 0 : i32
    %c0_i32_1 = arith.constant 0 : i32
    return %c0_i32, %c0_i32_0 : i32, i32
  }
  func.func @transform_5(%arg0: i32, %arg1: i32) -> (i32, i32) {
    %c0_i32 = arith.constant 0 : i32
    %c0_i32_0 = arith.constant 0 : i32
    return %arg0, %c0_i32 : i32, i32
  }
}

</mosaic_0001>

<llo_original>
// kernel: mlp_pallas.1
$region0: #{mlp_pallas.1}
  #allocation0 [shape = 'u32[]', space=smem, size = 0x4, offset = 0x4, fixed_abs, tag = 'smem constant byte address 0x4 - core index']
  #allocation1 [shape = 'u32[72,128]{1,0:T(1,128)}', space=vmem, size = 0x9000, scoped, tag = 'internal scratch']
  %s0 = inlined_call_operand.hbm [shape: f32[8,256], index: 0, kind: input, shape index: {}]
  %s1 = inlined_call_operand.hbm [shape: f32[256,512], index: 1, kind: input, shape index: {}]
  %s2 = inlined_call_operand.hbm [shape: f32[1,512], index: 2, kind: input, shape index: {}]
  %s3 = inlined_call_operand.hbm [shape: f32[512,256], index: 3, kind: input, shape index: {}]
  %s4 = inlined_call_operand.vmem [shape: f32[1,256], index: 4, kind: input, shape index: {}]
  %s5 = inlined_call_operand.hbm [shape: f32[8,256], index: 5, kind: output, shape index: {}]
  %s6 = sld [smem:[#allocation0]]
  $region54: #{mlp_pallas.1} parent=0
    _
  %s8 = ssub.s32 1, %s6
  %s9 = scalar_select 0, %s8, %s6
  $region1: #{mlp_pallas.1} parent=0
    #allocation2 [shape = 'u8[8192]{0}', space=vmem, size = 0x2000, scoped, tag = 'input window, operand 0, single buffered']
    #allocation3 [shape = 's32[1]{0}', space=sflag, size = 0x4, scoped, tag = 'scoped memory for mlp_pallas.1']
    #allocation4 [shape = 's32[1]{0}', space=sflag, size = 0x4, scoped, tag = 'scoped memory for mlp_pallas.1']
    #allocation5 [shape = 'u8[524288]{0}', space=vmem, size = 0x80000, scoped, tag = 'input window, operand 1, single buffered']
    #allocation6 [shape = 's32[1]{0}', space=sflag, size = 0x4, scoped, tag = 'scoped memory for mlp_pallas.1']
    #allocation7 [shape = 'u8[2048]{0}', space=vmem, size = 0x800, scoped, tag = 'input window, operand 2, single buffered']
    #allocation8 [shape = 'u8[524288]{0}', space=vmem, size = 0x80000, scoped, tag = 'input window, operand 3, single buffered']
    #allocation9 [shape = 's32[1]{0}', space=sflag, size = 0x4, scoped, tag = 'scoped memory for mlp_pallas.1']
    #allocation10 [shape = 'u8[8192]{0}', space=vmem, size = 0x2000, scoped, tag = 'output window, operand 0, single buffered']
    %10 = vsyncpa [#allocation3], 0
    %11 = vsyncpa [#allocation6], 0
    %12 = vsyncpa [#allocation9], 0
    %13 = vsyncpa [#allocation4], 0
    // Predicated region
    $region2: #{mlp_pallas.1} parent=1 // pred_check
      _
    $region3: #{mlp_pallas.1} parent=1 // pred_check_branch
      %15 = sbr.rel (0) target = $region5
    $region4: #{mlp_pallas.1} parent=1 // pred_region
      %17 = vsyncadd [#allocation3], 0
      %s19 = sshll.u32 %s0, 4
      %s20 = int_to_ptr.hbm [resolvable:$true] %s19
      %s21 = sshll.u32 [#allocation2], 4
      %s22 = int_to_ptr.vmem [resolvable:$true] %s21
      %24 = dma.hbm_to_vmem [thread:$0]  %s20, 256, %s22, [#allocation3]
    $region5: #{mlp_pallas.1} parent=1 // pred_fallthru
      _
    // Predicated region
    $region6: #{mlp_pallas.1} parent=1 // pred_check
      _
    $region7: #{mlp_pallas.1} parent=1 // pred_check_branch
      %26 = sbr.rel (0) target = $region9
    $region8: #{mlp_pallas.1} parent=1 // pred_region
      %28 = vsyncadd [#allocation6], 0
      %s29 = sshll.u32 %s1, 4
      %s30 = int_to_ptr.hbm [resolvable:$true] %s29
      %s31 = sshll.u32 [#allocation5], 4
      %s32 = int_to_ptr.vmem [resolvable:$true] %s31
      %37 = dma.hbm_to_vmem [thread:$0]  %s30, 16384, %s32, [#allocation6], 512, 512, 32
    $region9: #{mlp_pallas.1} parent=1 // pred_fallthru
      _
    // Predicated region
    $region10: #{mlp_pallas.1} parent=1 // pred_check
      _
    $region11: #{mlp_pallas.1} parent=1 // pred_check_branch
      %39 = sbr.rel (0) target = $region13
    $region12: #{mlp_pallas.1} parent=1 // pred_region
      %41 = vsyncadd [#allocation6], 0
      %s43 = sshll.u32 %s2, 4
      %s44 = int_to_ptr.hbm [resolvable:$true] %s43
      %s45 = sshll.u32 [#allocation7], 4
      %s46 = int_to_ptr.vmem [resolvable:$true] %s45
      %48 = dma.hbm_to_vmem [thread:$0]  %s44, 64, %s46, [#allocation6]
    $region13: #{mlp_pallas.1} parent=1 // pred_fallthru
      _
    // Predicated region
    $region14: #{mlp_pallas.1} parent=1 // pred_check
      _
    $region15: #{mlp_pallas.1} parent=1 // pred_check_branch
      %50 = sbr.rel (0) target = $region17
    $region16: #{mlp_pallas.1} parent=1 // pred_region
      %52 = vsyncadd [#allocation9], 0
      %s53 = sshll.u32 %s3, 4
      %s54 = int_to_ptr.hbm [resolvable:$true] %s53
      %s55 = sshll.u32 [#allocation8], 4
      %s56 = int_to_ptr.vmem [resolvable:$true] %s55
      %61 = dma.hbm_to_vmem [thread:$0]  %s54, 16384, %s56, [#allocation9], 256, 256, 16
    $region17: #{mlp_pallas.1} parent=1 // pred_fallthru
      _
    // Predicated region
    $region18: #{mlp_pallas.1} parent=1 // pred_check
      _
    $region19: #{mlp_pallas.1} parent=1 // pred_check_branch
      %63 = sbr.rel (0) target = $region21
    $region20: #{mlp_pallas.1} parent=1 // pred_region
      _
    $region21: #{mlp_pallas.1} parent=1 // pred_fallthru
      _
    // Predicated region
    $region22: #{mlp_pallas.1} parent=1 // pred_check
      _
    $region23: #{mlp_pallas.1} parent=1 // pred_check_branch
      %65 = sbr.rel (0) target = $region25
    $region24: #{mlp_pallas.1} parent=1 // pred_region
      %67 = dma.done [#allocation3], 256
    $region25: #{mlp_pallas.1} parent=1 // pred_fallthru
      _
    // Predicated region
    $region26: #{mlp_pallas.1} parent=1 // pred_check
      _
    $region27: #{mlp_pallas.1} parent=1 // pred_check_branch
      %69 = sbr.rel (0) target = $region29
    $region28: #{mlp_pallas.1} parent=1 // pred_region
      %71 = dma.done [#allocation6], 16384
    $region29: #{mlp_pallas.1} parent=1 // pred_fallthru
      _
    // Predicated region
    $region30: #{mlp_pallas.1} parent=1 // pred_check
      _
    $region31: #{mlp_pallas.1} parent=1 // pred_check_branch
      %73 = sbr.rel (0) target = $region33
    $region32: #{mlp_pallas.1} parent=1 // pred_region
      %75 = dma.done [#allocation6], 64
    $region33: #{mlp_pallas.1} parent=1 // pred_fallthru
      _
    // Predicated region
    $region34: #{mlp_pallas.1} parent=1 // pred_check
      _
    $region35: #{mlp_pallas.1} parent=1 // pred_check_branch
      %77 = sbr.rel (0) target = $region37
    $region36: #{mlp_pallas.1} parent=1 // pred_region
      %79 = dma.done [#allocation9], 16384
    $region37: #{mlp_pallas.1} parent=1 // pred_fallthru
      _
    %p80 = scmp.eq.s32.totalorder 0, 0
    // Predicated region
    $region38: #{mlp_pallas.1} parent=1 // pred_check
      %p81 = pneg %p80
    $region39: #{mlp_pallas.1} parent=1 // pred_check_branch
      %83 = sbr.rel (%p81) target = $region41
    $region40: #{mlp_pallas.1} parent=1 // pred_region
      %84 = vst [vmem:[#allocation10] sm:$0xff] 0.0
      %85 = vst [vmem:[#allocation10 + $0x8] sm:$0xff] 0.0
    $region41: #{mlp_pallas.1} parent=1 // pred_fallthru
      _
    %v86 = vld [vmem:[#allocation2] sm:$0xff]
    %v87 = vld [vmem:[#allocation2 + $0x8] sm:$0xff]
    %v88 = vld [vmem:[#allocation5] sm:$0xff]
    %v89 = vld [vmem:[#allocation5 + $0x8] sm:$0xff]
    %v90 = vld [vmem:[#allocation5 + $0x10] sm:$0xff]
    %v91 = vld [vmem:[#allocation5 + $0x18] sm:$0xff]
    %v92 = vld [vmem:[#allocation5 + $0x20] sm:$0xff]
    %v93 = vld [vmem:[#allocation5 + $0x28] sm:$0xff]
    %v94 = vld [vmem:[#allocation5 + $0x30] sm:$0xff]
    %v95 = vld [vmem:[#allocation5 + $0x38] sm:$0xff]
    %v96 = vld [vmem:[#allocation5 + $0x40] sm:$0xff]
    %v97 = vld [vmem:[#allocation5 + $0x48] sm:$0xff]
    %v98 = vld [vmem:[#allocation5 + $0x50] sm:$0xff]
    %v99 = vld [vmem:[#allocation5 + $0x58] sm:$0xff]
    %v100 = vld [vmem:[#allocation5 + $0x60] sm:$0xff]
    %v101 = vld [vmem:[#allocation5 + $0x68] sm:$0xff]
    %v102 = vld [vmem:[#allocation5 + $0x70] sm:$0xff]
    %v103 = vld [vmem:[#allocation5 + $0x78] sm:$0xff]
    %v104 = vld [vmem:[#allocation5 + $0x80] sm:$0xff]
    %v105 = vld [vmem:[#allocation5 + $0x88] sm:$0xff]
    %v106 = vld [vmem:[#allocation5 + $0x90] sm:$0xff]
    %v107 = vld [vmem:[#allocation5 + $0x98] sm:$0xff]
    %v108 = vld [vmem:[#allocation5 + $0xa0] sm:$0xff]
    %v109 = vld [vmem:[#allocation5 + $0xa8] sm:$0xff]
    %v110 = vld [vmem:[#allocation5 + $0xb0] sm:$0xff]
    %v111 = vld [vmem:[#allocation5 + $0xb8] sm:$0xff]
    %v112 = vld [vmem:[#allocation5 + $0xc0] sm:$0xff]
    %v113 = vld [vmem:[#allocation5 + $0xc8] sm:$0xff]
    %v114 = vld [vmem:[#allocation5 + $0xd0] sm:$0xff]
    %v115 = vld [vmem:[#allocation5 + $0xd8] sm:$0xff]
    %v116 = vld [vmem:[#allocation5 + $0xe0] sm:$0xff]
    %v117 = vld [vmem:[#allocation5 + $0xe8] sm:$0xff]
    %v118 = vld [vmem:[#allocation5 + $0xf0] sm:$0xff]
    %v119 = vld [vmem:[#allocation5 + $0xf8] sm:$0xff]
    %v120 = vld [vmem:[#allocation5 + $0x100] sm:$0xff]
    %v121 = vld [vmem:[#allocation5 + $0x108] sm:$0xff]
    %v122 = vld [vmem:[#allocation5 + $0x110] sm:$0xff]
    %v123 = vld [vmem:[#allocation5 + $0x118] sm:$0xff]
    %v124 = vld [vmem:[#allocation5 + $0x120] sm:$0xff]
    %v125 = vld [vmem:[#allocation5 + $0x128] sm:$0xff]
    %v126 = vld [vmem:[#allocation5 + $0x130] sm:$0xff]
    %v127 = vld [vmem:[#allocation5 + $0x138] sm:$0xff]
    %v128 = vld [vmem:[#allocation5 + $0x140] sm:$0xff]
    %v129 = vld [vmem:[#allocation5 + $0x148] sm:$0xff]
    %v130 = vld [vmem:[#allocation5 + $0x150] sm:$0xff]
    %v131 = vld [vmem:[#allocation5 + $0x158] sm:$0xff]
    %v132 = vld [vmem:[#allocation5 + $0x160] sm:$0xff]
    %v133 = vld [vmem:[#allocation5 + $0x168] sm:$0xff]
    %v134 = vld [vmem:[#allocation5 + $0x170] sm:$0xff]
    %v135 = vld [vmem:[#allocation5 + $0x178] sm:$0xff]
    %v136 = vld [vmem:[#allocation5 + $0x180] sm:$0xff]
    %v137 = vld [vmem:[#allocation5 + $0x188] sm:$0xff]
    %v138 = vld [vmem:[#allocation5 + $0x190] sm:$0xff]
    %v139 = vld [vmem:[#allocation5 + $0x198] sm:$0xff]
    %v140 = vld [vmem:[#allocation5 + $0x1a0] sm:$0xff]
    %v141 = vld [vmem:[#allocation5 + $0x1a8] sm:$0xff]
    %v142 = vld [vmem:[#allocation5 + $0x1b0] sm:$0xff]
    %v143 = vld [vmem:[#allocation5 + $0x1b8] sm:$0xff]
    %v144 = vld [vmem:[#allocation5 + $0x1c0] sm:$0xff]
    %v145 = vld [vmem:[#allocation5 + $0x1c8] sm:$0xff]
    %v146 = vld [vmem:[#allocation5 + $0x1d0] sm:$0xff]
    %v147 = vld [vmem:[#allocation5 + $0x1d8] sm:$0xff]
    %v148 = vld [vmem:[#allocation5 + $0x1e0] sm:$0xff]
    %v149 = vld [vmem:[#allocation5 + $0x1e8] sm:$0xff]
    %v150 = vld [vmem:[#allocation5 + $0x1f0] sm:$0xff]
    %v151 = vld [vmem:[#allocation5 + $0x1f8] sm:$0xff]
    %v152 = vld [vmem:[#allocation5 + $0x200] sm:$0xff]
    %v153 = vld [vmem:[#allocation5 + $0x208] sm:$0xff]
    %v154 = vld [vmem:[#allocation5 + $0x210] sm:$0xff]
    %v155 = vld [vmem:[#allocation5 + $0x218] sm:$0xff]
    %v156 = vld [vmem:[#allocation5 + $0x220] sm:$0xff]
    %v157 = vld [vmem:[#allocation5 + $0x228] sm:$0xff]
    %v158 = vld [vmem:[#allocation5 + $0x230] sm:$0xff]
    %v159 = vld [vmem:[#allocation5 + $0x238] sm:$0xff]
    %v160 = vld [vmem:[#allocation5 + $0x240] sm:$0xff]
    %v161 = vld [vmem:[#allocation5 + $0x248] sm:$0xff]
    %v162 = vld [vmem:[#allocation5 + $0x250] sm:$0xff]
    %v163 = vld [vmem:[#allocation5 + $0x258] sm:$0xff]
    %v164 = vld [vmem:[#allocation5 + $0x260] sm:$0xff]
    %v165 = vld [vmem:[#allocation5 + $0x268] sm:$0xff]
    %v166 = vld [vmem:[#allocation5 + $0x270] sm:$0xff]
    %v167 = vld [vmem:[#allocation5 + $0x278] sm:$0xff]
    %v168 = vld [vmem:[#allocation5 + $0x280] sm:$0xff]
    %v169 = vld [vmem:[#allocation5 + $0x288] sm:$0xff]
    %v170 = vld [vmem:[#allocation5 + $0x290] sm:$0xff]
    %v171 = vld [vmem:[#allocation5 + $0x298] sm:$0xff]
    %v172 = vld [vmem:[#allocation5 + $0x2a0] sm:$0xff]
    %v173 = vld [vmem:[#allocation5 + $0x2a8] sm:$0xff]
    %v174 = vld [vmem:[#allocation5 + $0x2b0] sm:$0xff]
    %v175 = vld [vmem:[#allocation5 + $0x2b8] sm:$0xff]
    %v176 = vld [vmem:[#allocation5 + $0x2c0] sm:$0xff]
    %v177 = vld [vmem:[#allocation5 + $0x2c8] sm:$0xff]
    %v178 = vld [vmem:[#allocation5 + $0x2d0] sm:$0xff]
    %v179 = vld [vmem:[#allocation5 + $0x2d8] sm:$0xff]
    %v180 = vld [vmem:[#allocation5 + $0x2e0] sm:$0xff]
    %v181 = vld [vmem:[#allocation5 + $0x2e8] sm:$0xff]
    %v182 = vld [vmem:[#allocation5 + $0x2f0] sm:$0xff]
    %v183 = vld [vmem:[#allocation5 + $0x2f8] sm:$0xff]
    %v184 = vld [vmem:[#allocation5 + $0x300] sm:$0xff]
    %v185 = vld [vmem:[#allocation5 + $0x308] sm:$0xff]
    %v186 = vld [vmem:[#allocation5 + $0x310] sm:$0xff]
    %v187 = vld [vmem:[#allocation5 + $0x318] sm:$0xff]
    %v188 = vld [vmem:[#allocation5 + $0x320] sm:$0xff]
    %v189 = vld [vmem:[#allocation5 + $0x328] sm:$0xff]
    %v190 = vld [vmem:[#allocation5 + $0x330] sm:$0xff]
    %v191 = vld [vmem:[#allocation5 + $0x338] sm:$0xff]
    %v192 = vld [vmem:[#allocation5 + $0x340] sm:$0xff]
    %v193 = vld [vmem:[#allocation5 + $0x348] sm:$0xff]
    %v194 = vld [vmem:[#allocation5 + $0x350] sm:$0xff]
    %v195 = vld [vmem:[#allocation5 + $0x358] sm:$0xff]
    %v196 = vld [vmem:[#allocation5 + $0x360] sm:$0xff]
    %v197 = vld [vmem:[#allocation5 + $0x368] sm:$0xff]
    %v198 = vld [vmem:[#allocation5 + $0x370] sm:$0xff]
    %v199 = vld [vmem:[#allocation5 + $0x378] sm:$0xff]
    %v200 = vld [vmem:[#allocation5 + $0x380] sm:$0xff]
    %v201 = vld [vmem:[#allocation5 + $0x388] sm:$0xff]
    %v202 = vld [vmem:[#allocation5 + $0x390] sm:$0xff]
    %v203 = vld [vmem:[#allocation5 + $0x398] sm:$0xff]
    %v204 = vld [vmem:[#allocation5 + $0x3a0] sm:$0xff]
    %v205 = vld [vmem:[#allocation5 + $0x3a8] sm:$0xff]
    %v206 = vld [vmem:[#allocation5 + $0x3b0] sm:$0xff]
    %v207 = vld [vmem:[#allocation5 + $0x3b8] sm:$0xff]
    %v208 = vld [vmem:[#allocation5 + $0x3c0] sm:$0xff]
    %v209 = vld [vmem:[#allocation5 + $0x3c8] sm:$0xff]
    %v210 = vld [vmem:[#allocation5 + $0x3d0] sm:$0xff]
    %v211 = vld [vmem:[#allocation5 + $0x3d8] sm:$0xff]
    %v212 = vld [vmem:[#allocation5 + $0x3e0] sm:$0xff]
    %v213 = vld [vmem:[#allocation5 + $0x3e8] sm:$0xff]
    %v214 = vld [vmem:[#allocation5 + $0x3f0] sm:$0xff]
    %v215 = vld [vmem:[#allocation5 + $0x3f8] sm:$0xff]
    %v216 = vld [vmem:[#allocation7] sm:$0xf]
    %v218 = vperm.slane %v216, 0
    %v219 = vperm.slane %v216, 1
    %v220 = vperm.slane %v216, 2
    %v221 = vperm.slane %v216, 3
    %226 = vmatpush.msra.mxu0 %v148
    %227 = vmatpush.msra.mxu0 %v144
    %228 = vmatpush.msra.mxu0 %v140
    %229 = vmatpush.msra.mxu0 %v136
    %230 = vmatpush.msra.mxu0 %v132
    %231 = vmatpush.msra.mxu0 %v128
    %232 = vmatpush.msra.mxu0 %v124
    %233 = vmatpush.msra.mxu0 %v120
    %234 = vmatpush.msra.mxu0 %v116
    %235 = vmatpush.msra.mxu0 %v112
    %236 = vmatpush.msra.mxu0 %v108
    %237 = vmatpush.msra.mxu0 %v104
    %238 = vmatpush.msra.mxu0 %v100
    %239 = vmatpush.msra.mxu0 %v96
    %240 = vmatpush.msra.mxu0 %v92
    %241 = vmatpush.msra.mxu0 %v88
    %242 = vmatmul.f32.gmra.mxu0 %v86
    %v243 = vpop.f32.mrf.mxu0
    %v244 = vadd.f32 %v218, %v243
    %245 = vdwg.mxu0
    %246 = vmatpush.msra.mxu0 %v212
    %247 = vmatpush.msra.mxu0 %v208
    %248 = vmatpush.msra.mxu0 %v204
    %249 = vmatpush.msra.mxu0 %v200
    %250 = vmatpush.msra.mxu0 %v196
    %251 = vmatpush.msra.mxu0 %v192
    %252 = vmatpush.msra.mxu0 %v188
    %253 = vmatpush.msra.mxu0 %v184
    %254 = vmatpush.msra.mxu0 %v180
    %255 = vmatpush.msra.mxu0 %v176
    %256 = vmatpush.msra.mxu0 %v172
    %257 = vmatpush.msra.mxu0 %v168
    %258 = vmatpush.msra.mxu0 %v164
    %259 = vmatpush.msra.mxu0 %v160
    %260 = vmatpush.msra.mxu0 %v156
    %261 = vmatpush.msra.mxu0 %v152
    %262 = vmatmul.f32.gmra.mxu0 %v87
    %v263 = vpop.f32.mrf.mxu0
    %v264 = vadd.f32 %v244, %v263
    %265 = vdwg.mxu0
    %266 = vmatpush.msra.mxu0 %v149
    %267 = vmatpush.msra.mxu0 %v145
    %268 = vmatpush.msra.mxu0 %v141
    %269 = vmatpush.msra.mxu0 %v137
    %270 = vmatpush.msra.mxu0 %v133
    %271 = vmatpush.msra.mxu0 %v129
    %272 = vmatpush.msra.mxu0 %v125
    %273 = vmatpush.msra.mxu0 %v121
    %274 = vmatpush.msra.mxu0 %v117
    %275 = vmatpush.msra.mxu0 %v113
    %276 = vmatpush.msra.mxu0 %v109
    %277 = vmatpush.msra.mxu0 %v105
    %278 = vmatpush.msra.mxu0 %v101
    %279 = vmatpush.msra.mxu0 %v97
    %280 = vmatpush.msra.mxu0 %v93
    %281 = vmatpush.msra.mxu0 %v89
    %282 = vmatmul.f32.gmra.mxu0 %v86
    %v283 = vpop.f32.mrf.mxu0
    %v284 = vadd.f32 %v219, %v283
    %285 = vdwg.mxu0
    %286 = vmatpush.msra.mxu0 %v213
    %287 = vmatpush.msra.mxu0 %v209
    %288 = vmatpush.msra.mxu0 %v205
    %289 = vmatpush.msra.mxu0 %v201
    %290 = vmatpush.msra.mxu0 %v197
    %291 = vmatpush.msra.mxu0 %v193
    %292 = vmatpush.msra.mxu0 %v189
    %293 = vmatpush.msra.mxu0 %v185
    %294 = vmatpush.msra.mxu0 %v181
    %295 = vmatpush.msra.mxu0 %v177
    %296 = vmatpush.msra.mxu0 %v173
    %297 = vmatpush.msra.mxu0 %v169
    %298 = vmatpush.msra.mxu0 %v165
    %299 = vmatpush.msra.mxu0 %v161
    %300 = vmatpush.msra.mxu0 %v157
    %301 = vmatpush.msra.mxu0 %v153
    %302 = vmatmul.f32.gmra.mxu0 %v87
    %v303 = vpop.f32.mrf.mxu0
    %v304 = vadd.f32 %v284, %v303
    %305 = vdwg.mxu0
    %306 = vmatpush.msra.mxu0 %v150
    %307 = vmatpush.msra.mxu0 %v146
    %308 = vmatpush.msra.mxu0 %v142
    %309 = vmatpush.msra.mxu0 %v138
    %310 = vmatpush.msra.mxu0 %v134
    %311 = vmatpush.msra.mxu0 %v130
    %312 = vmatpush.msra.mxu0 %v126
    %313 = vmatpush.msra.mxu0 %v122
    %314 = vmatpush.msra.mxu0 %v118
    %315 = vmatpush.msra.mxu0 %v114
    %316 = vmatpush.msra.mxu0 %v110
    %317 = vmatpush.msra.mxu0 %v106
    %318 = vmatpush.msra.mxu0 %v102
    %319 = vmatpush.msra.mxu0 %v98
    %320 = vmatpush.msra.mxu0 %v94
    %321 = vmatpush.msra.mxu0 %v90
    %322 = vmatmul.f32.gmra.mxu0 %v86
    %v323 = vpop.f32.mrf.mxu0
    %v324 = vadd.f32 %v220, %v323
    %325 = vdwg.mxu0
    %326 = vmatpush.msra.mxu0 %v214
    %327 = vmatpush.msra.mxu0 %v210
    %328 = vmatpush.msra.mxu0 %v206
    %329 = vmatpush.msra.mxu0 %v202
    %330 = vmatpush.msra.mxu0 %v198
    %331 = vmatpush.msra.mxu0 %v194
    %332 = vmatpush.msra.mxu0 %v190
    %333 = vmatpush.msra.mxu0 %v186
    %334 = vmatpush.msra.mxu0 %v182
    %335 = vmatpush.msra.mxu0 %v178
    %336 = vmatpush.msra.mxu0 %v174
    %337 = vmatpush.msra.mxu0 %v170
    %338 = vmatpush.msra.mxu0 %v166
    %339 = vmatpush.msra.mxu0 %v162
    %340 = vmatpush.msra.mxu0 %v158
    %341 = vmatpush.msra.mxu0 %v154
    %342 = vmatmul.f32.gmra.mxu0 %v87
    %v343 = vpop.f32.mrf.mxu0
    %v344 = vadd.f32 %v324, %v343
    %345 = vdwg.mxu0
    %346 = vmatpush.msra.mxu0 %v151
    %347 = vmatpush.msra.mxu0 %v147
    %348 = vmatpush.msra.mxu0 %v143
    %349 = vmatpush.msra.mxu0 %v139
    %350 = vmatpush.msra.mxu0 %v135
    %351 = vmatpush.msra.mxu0 %v131
    %352 = vmatpush.msra.mxu0 %v127
    %353 = vmatpush.msra.mxu0 %v123
    %354 = vmatpush.msra.mxu0 %v119
    %355 = vmatpush.msra.mxu0 %v115
    %356 = vmatpush.msra.mxu0 %v111
    %357 = vmatpush.msra.mxu0 %v107
    %358 = vmatpush.msra.mxu0 %v103
    %359 = vmatpush.msra.mxu0 %v99
    %360 = vmatpush.msra.mxu0 %v95
    %361 = vmatpush.msra.mxu0 %v91
    %362 = vmatmul.f32.gmra.mxu0 %v86
    %v363 = vpop.f32.mrf.mxu0
    %v364 = vadd.f32 %v221, %v363
    %365 = vdwg.mxu0
    %366 = vmatpush.msra.mxu0 %v215
    %367 = vmatpush.msra.mxu0 %v211
    %368 = vmatpush.msra.mxu0 %v207
    %369 = vmatpush.msra.mxu0 %v203
    %370 = vmatpush.msra.mxu0 %v199
    %371 = vmatpush.msra.mxu0 %v195
    %372 = vmatpush.msra.mxu0 %v191
    %373 = vmatpush.msra.mxu0 %v187
    %374 = vmatpush.msra.mxu0 %v183
    %375 = vmatpush.msra.mxu0 %v179
    %376 = vmatpush.msra.mxu0 %v175
    %377 = vmatpush.msra.mxu0 %v171
    %378 = vmatpush.msra.mxu0 %v167
    %379 = vmatpush.msra.mxu0 %v163
    %380 = vmatpush.msra.mxu0 %v159
    %381 = vmatpush.msra.mxu0 %v155
    %382 = vmatmul.f32.gmra.mxu0 %v87
    %v383 = vpop.f32.mrf.mxu0
    %v384 = vadd.f32 %v364, %v383
    %385 = vdwg.mxu0
    %v386 = vxor.u32 %v264, 2147483648
    %v387 = vxor.u32 %v304, 2147483648
    %v388 = vxor.u32 %v344, 2147483648
    %v389 = vxor.u32 %v384, 2147483648
    %v390 = vmul.f32 %v386, 1.442695
    %v391 = vpow.pop %v390
    %v392 = vmul.f32 %v387, 1.442695
    %v393 = vpow.pop %v392
    %v394 = vmul.f32 %v388, 1.442695
    %v395 = vpow.pop %v394
    %v396 = vmul.f32 %v389, 1.442695
    %v397 = vpow.pop %v396
    %v398 = vadd.f32 %v391, 1.0
    %v399 = vadd.f32 %v393, 1.0
    %v400 = vadd.f32 %v395, 1.0
    %v401 = vadd.f32 %v397, 1.0
    %v402 = vrcp.pop %v398
    %v403 = vmul.f32 %v398, %v402
    %v404 = vsub.f32 1.0, %v403
    %v405 = vmul.f32 %v402, %v404
    %v406 = vadd.f32 %v402, %v405
    %vm407 = vweird.f32 %v398
    %vm408 = vweird.f32 %v402
    %vm409 = vmor %vm407, %vm408
    %v410 = vsel %vm409, %v402, %v406
    %v411 = vand.u32 2147483647, %v398
    %vm412 = vcmp.eq.f32.partialorder %v411, 8.507059e+37
    %v413 = vand.u32 %v398, 2147483648
    %v414 = vor.u32 1.1754944e-38, %v413
    %v415 = vsel %vm412, %v414, %v410
    %v416 = vmul.f32 1.0, %v415
    %v417 = vrcp.pop %v399
    %v418 = vmul.f32 %v399, %v417
    %v419 = vsub.f32 1.0, %v418
    %v420 = vmul.f32 %v417, %v419
    %v421 = vadd.f32 %v417, %v420
    %vm422 = vweird.f32 %v399
    %vm423 = vweird.f32 %v417
    %vm424 = vmor %vm422, %vm423
    %v425 = vsel %vm424, %v417, %v421
    %v426 = vand.u32 2147483647, %v399
    %vm427 = vcmp.eq.f32.partialorder %v426, 8.507059e+37
    %v428 = vand.u32 %v399, 2147483648
    %v429 = vor.u32 1.1754944e-38, %v428
    %v430 = vsel %vm427, %v429, %v425
    %v431 = vmul.f32 1.0, %v430
    %v432 = vrcp.pop %v400
    %v433 = vmul.f32 %v400, %v432
    %v434 = vsub.f32 1.0, %v433
    %v435 = vmul.f32 %v432, %v434
    %v436 = vadd.f32 %v432, %v435
    %vm437 = vweird.f32 %v400
    %vm438 = vweird.f32 %v432
    %vm439 = vmor %vm437, %vm438
    %v440 = vsel %vm439, %v432, %v436
    %v441 = vand.u32 2147483647, %v400
    %vm442 = vcmp.eq.f32.partialorder %v441, 8.507059e+37
    %v443 = vand.u32 %v400, 2147483648
    %v444 = vor.u32 1.1754944e-38, %v443
    %v445 = vsel %vm442, %v444, %v440
    %v446 = vmul.f32 1.0, %v445
    %v447 = vrcp.pop %v401
    %v448 = vmul.f32 %v401, %v447
    %v449 = vsub.f32 1.0, %v448
    %v450 = vmul.f32 %v447, %v449
    %v451 = vadd.f32 %v447, %v450
    %vm452 = vweird.f32 %v401
    %vm453 = vweird.f32 %v447
    %vm454 = vmor %vm452, %vm453
    %v455 = vsel %vm454, %v447, %v451
    %v456 = vand.u32 2147483647, %v401
    %vm457 = vcmp.eq.f32.partialorder %v456, 8.507059e+37
    %v458 = vand.u32 %v401, 2147483648
    %v459 = vor.u32 1.1754944e-38, %v458
    %v460 = vsel %vm457, %v459, %v455
    %v461 = vmul.f32 1.0, %v460
    %v462 = vmul.f32 %v264, %v416
    %v463 = vmul.f32 %v304, %v431
    %v464 = vmul.f32 %v344, %v446
    %v465 = vmul.f32 %v384, %v461
    %v466 = vld [vmem:[#allocation10] sm:$0xff]
    %v467 = vld [vmem:[#allocation10 + $0x8] sm:$0xff]
    %v468 = vld [vmem:[#allocation8] sm:$0xff]
    %v469 = vld [vmem:[#allocation8 + $0x8] sm:$0xff]
    %v470 = vld [vmem:[#allocation8 + $0x10] sm:$0xff]
    %v471 = vld [vmem:[#allocation8 + $0x18] sm:$0xff]
    %v472 = vld [vmem:[#allocation8 + $0x20] sm:$0xff]
    %v473 = vld [vmem:[#allocation8 + $0x28] sm:$0xff]
    %v474 = vld [vmem:[#allocation8 + $0x30] sm:$0xff]
    %v475 = vld [vmem:[#allocation8 + $0x38] sm:$0xff]
    %v476 = vld [vmem:[#allocation8 + $0x40] sm:$0xff]
    %v477 = vld [vmem:[#allocation8 + $0x48] sm:$0xff]
    %v478 = vld [vmem:[#allocation8 + $0x50] sm:$0xff]
    %v479 = vld [vmem:[#allocation8 + $0x58] sm:$0xff]
    %v480 = vld [vmem:[#allocation8 + $0x60] sm:$0xff]
    %v481 = vld [vmem:[#allocation8 + $0x68] sm:$0xff]
    %v482 = vld [vmem:[#allocation8 + $0x70] sm:$0xff]
    %v483 = vld [vmem:[#allocation8 + $0x78] sm:$0xff]
    %v484 = vld [vmem:[#allocation8 + $0x80] sm:$0xff]
    %v485 = vld [vmem:[#allocation8 + $0x88] sm:$0xff]
    %v486 = vld [vmem:[#allocation8 + $0x90] sm:$0xff]
    %v487 = vld [vmem:[#allocation8 + $0x98] sm:$0xff]
    %v488 = vld [vmem:[#allocation8 + $0xa0] sm:$0xff]
    %v489 = vld [vmem:[#allocation8 + $0xa8] sm:$0xff]
    %v490 = vld [vmem:[#allocation8 + $0xb0] sm:$0xff]
    %v491 = vld [vmem:[#allocation8 + $0xb8] sm:$0xff]
    %v492 = vld [vmem:[#allocation8 + $0xc0] sm:$0xff]
    %v493 = vld [vmem:[#allocation8 + $0xc8] sm:$0xff]
    %v494 = vld [vmem:[#allocation8 + $0xd0] sm:$0xff]
    %v495 = vld [vmem:[#allocation8 + $0xd8] sm:$0xff]
    %v496 = vld [vmem:[#allocation8 + $0xe0] sm:$0xff]
    %v497 = vld [vmem:[#allocation8 + $0xe8] sm:$0xff]
    %v498 = vld [vmem:[#allocation8 + $0xf0] sm:$0xff]
    %v499 = vld [vmem:[#allocation8 + $0xf8] sm:$0xff]
    %v500 = vld [vmem:[#allocation8 + $0x100] sm:$0xff]
    %v501 = vld [vmem:[#allocation8 + $0x108] sm:$0xff]
    %v502 = vld [vmem:[#allocation8 + $0x110] sm:$0xff]
    %v503 = vld [vmem:[#allocation8 + $0x118] sm:$0xff]
    %v504 = vld [vmem:[#allocation8 + $0x120] sm:$0xff]
    %v505 = vld [vmem:[#allocation8 + $0x128] sm:$0xff]
    %v506 = vld [vmem:[#allocation8 + $0x130] sm:$0xff]
    %v507 = vld [vmem:[#allocation8 + $0x138] sm:$0xff]
    %v508 = vld [vmem:[#allocation8 + $0x140] sm:$0xff]
    %v509 = vld [vmem:[#allocation8 + $0x148] sm:$0xff]
    %v510 = vld [vmem:[#allocation8 + $0x150] sm:$0xff]
    %v511 = vld [vmem:[#allocation8 + $0x158] sm:$0xff]
    %v512 = vld [vmem:[#allocation8 + $0x160] sm:$0xff]
    %v513 = vld [vmem:[#allocation8 + $0x168] sm:$0xff]
    %v514 = vld [vmem:[#allocation8 + $0x170] sm:$0xff]
    %v515 = vld [vmem:[#allocation8 + $0x178] sm:$0xff]
    %v516 = vld [vmem:[#allocation8 + $0x180] sm:$0xff]
    %v517 = vld [vmem:[#allocation8 + $0x188] sm:$0xff]
    %v518 = vld [vmem:[#allocation8 + $0x190] sm:$0xff]
    %v519 = vld [vmem:[#allocation8 + $0x198] sm:$0xff]
    %v520 = vld [vmem:[#allocation8 + $0x1a0] sm:$0xff]
    %v521 = vld [vmem:[#allocation8 + $0x1a8] sm:$0xff]
    %v522 = vld [vmem:[#allocation8 + $0x1b0] sm:$0xff]
    %v523 = vld [vmem:[#allocation8 + $0x1b8] sm:$0xff]
    %v524 = vld [vmem:[#allocation8 + $0x1c0] sm:$0xff]
    %v525 = vld [vmem:[#allocation8 + $0x1c8] sm:$0xff]
    %v526 = vld [vmem:[#allocation8 + $0x1d0] sm:$0xff]
    %v527 = vld [vmem:[#allocation8 + $0x1d8] sm:$0xff]
    %v528 = vld [vmem:[#allocation8 + $0x1e0] sm:$0xff]
    %v529 = vld [vmem:[#allocation8 + $0x1e8] sm:$0xff]
    %v530 = vld [vmem:[#allocation8 + $0x1f0] sm:$0xff]
    %v531 = vld [vmem:[#allocation8 + $0x1f8] sm:$0xff]
    %v532 = vld [vmem:[#allocation8 + $0x200] sm:$0xff]
    %v533 = vld [vmem:[#allocation8 + $0x208] sm:$0xff]
    %v534 = vld [vmem:[#allocation8 + $0x210] sm:$0xff]
    %v535 = vld [vmem:[#allocation8 + $0x218] sm:$0xff]
    %v536 = vld [vmem:[#allocation8 + $0x220] sm:$0xff]
    %v537 = vld [vmem:[#allocation8 + $0x228] sm:$0xff]
    %v538 = vld [vmem:[#allocation8 + $0x230] sm:$0xff]
    %v539 = vld [vmem:[#allocation8 + $0x238] sm:$0xff]
    %v540 = vld [vmem:[#allocation8 + $0x240] sm:$0xff]
    %v541 = vld [vmem:[#allocation8 + $0x248] sm:$0xff]
    %v542 = vld [vmem:[#allocation8 + $0x250] sm:$0xff]
    %v543 = vld [vmem:[#allocation8 + $0x258] sm:$0xff]
    %v544 = vld [vmem:[#allocation8 + $0x260] sm:$0xff]
    %v545 = vld [vmem:[#allocation8 + $0x268] sm:$0xff]
    %v546 = vld [vmem:[#allocation8 + $0x270] sm:$0xff]
    %v547 = vld [vmem:[#allocation8 + $0x278] sm:$0xff]
    %v548 = vld [vmem:[#allocation8 + $0x280] sm:$0xff]
    %v549 = vld [vmem:[#allocation8 + $0x288] sm:$0xff]
    %v550 = vld [vmem:[#allocation8 + $0x290] sm:$0xff]
    %v551 = vld [vmem:[#allocation8 + $0x298] sm:$0xff]
    %v552 = vld [vmem:[#allocation8 + $0x2a0] sm:$0xff]
    %v553 = vld [vmem:[#allocation8 + $0x2a8] sm:$0xff]
    %v554 = vld [vmem:[#allocation8 + $0x2b0] sm:$0xff]
    %v555 = vld [vmem:[#allocation8 + $0x2b8] sm:$0xff]
    %v556 = vld [vmem:[#allocation8 + $0x2c0] sm:$0xff]
    %v557 = vld [vmem:[#allocation8 + $0x2c8] sm:$0xff]
    %v558 = vld [vmem:[#allocation8 + $0x2d0] sm:$0xff]
    %v559 = vld [vmem:[#allocation8 + $0x2d8] sm:$0xff]
    %v560 = vld [vmem:[#allocation8 + $0x2e0] sm:$0xff]
    %v561 = vld [vmem:[#allocation8 + $0x2e8] sm:$0xff]
    %v562 = vld [vmem:[#allocation8 + $0x2f0] sm:$0xff]
    %v563 = vld [vmem:[#allocation8 + $0x2f8] sm:$0xff]
    %v564 = vld [vmem:[#allocation8 + $0x300] sm:$0xff]
    %v565 = vld [vmem:[#allocation8 + $0x308] sm:$0xff]
    %v566 = vld [vmem:[#allocation8 + $0x310] sm:$0xff]
    %v567 = vld [vmem:[#allocation8 + $0x318] sm:$0xff]
    %v568 = vld [vmem:[#allocation8 + $0x320] sm:$0xff]
    %v569 = vld [vmem:[#allocation8 + $0x328] sm:$0xff]
    %v570 = vld [vmem:[#allocation8 + $0x330] sm:$0xff]
    %v571 = vld [vmem:[#allocation8 + $0x338] sm:$0xff]
    %v572 = vld [vmem:[#allocation8 + $0x340] sm:$0xff]
    %v573 = vld [vmem:[#allocation8 + $0x348] sm:$0xff]
    %v574 = vld [vmem:[#allocation8 + $0x350] sm:$0xff]
    %v575 = vld [vmem:[#allocation8 + $0x358] sm:$0xff]
    %v576 = vld [vmem:[#allocation8 + $0x360] sm:$0xff]
    %v577 = vld [vmem:[#allocation8 + $0x368] sm:$0xff]
    %v578 = vld [vmem:[#allocation8 + $0x370] sm:$0xff]
    %v579 = vld [vmem:[#allocation8 + $0x378] sm:$0xff]
    %v580 = vld [vmem:[#allocation8 + $0x380] sm:$0xff]
    %v581 = vld [vmem:[#allocation8 + $0x388] sm:$0xff]
    %v582 = vld [vmem:[#allocation8 + $0x390] sm:$0xff]
    %v583 = vld [vmem:[#allocation8 + $0x398] sm:$0xff]
    %v584 = vld [vmem:[#allocation8 + $0x3a0] sm:$0xff]
    %v585 = vld [vmem:[#allocation8 + $0x3a8] sm:$0xff]
    %v586 = vld [vmem:[#allocation8 + $0x3b0] sm:$0xff]
    %v587 = vld [vmem:[#allocation8 + $0x3b8] sm:$0xff]
    %v588 = vld [vmem:[#allocation8 + $0x3c0] sm:$0xff]
    %v589 = vld [vmem:[#allocation8 + $0x3c8] sm:$0xff]
    %v590 = vld [vmem:[#allocation8 + $0x3d0] sm:$0xff]
    %v591 = vld [vmem:[#allocation8 + $0x3d8] sm:$0xff]
    %v592 = vld [vmem:[#allocation8 + $0x3e0] sm:$0xff]
    %v593 = vld [vmem:[#allocation8 + $0x3e8] sm:$0xff]
    %v594 = vld [vmem:[#allocation8 + $0x3f0] sm:$0xff]
    %v595 = vld [vmem:[#allocation8 + $0x3f8] sm:$0xff]
    %596 = vmatpush.msra.mxu0 %v498
    %597 = vmatpush.msra.mxu0 %v496
    %598 = vmatpush.msra.mxu0 %v494
    %599 = vmatpush.msra.mxu0 %v492
    %600 = vmatpush.msra.mxu0 %v490
    %601 = vmatpush.msra.mxu0 %v488
    %602 = vmatpush.msra.mxu0 %v486
    %603 = vmatpush.msra.mxu0 %v484
    %604 = vmatpush.msra.mxu0 %v482
    %605 = vmatpush.msra.mxu0 %v480
    %606 = vmatpush.msra.mxu0 %v478
    %607 = vmatpush.msra.mxu0 %v476
    %608 = vmatpush.msra.mxu0 %v474
    %609 = vmatpush.msra.mxu0 %v472
    %610 = vmatpush.msra.mxu0 %v470
    %611 = vmatpush.msra.mxu0 %v468
    %612 = vmatmul.f32.gmra.mxu0 %v462
    %v613 = vpop.f32.mrf.mxu0
    %v614 = vadd.f32 0.0, %v613
    %615 = vdwg.mxu0
    %616 = vmatpush.msra.mxu0 %v530
    %617 = vmatpush.msra.mxu0 %v528
    %618 = vmatpush.msra.mxu0 %v526
    %619 = vmatpush.msra.mxu0 %v524
    %620 = vmatpush.msra.mxu0 %v522
    %621 = vmatpush.msra.mxu0 %v520
    %622 = vmatpush.msra.mxu0 %v518
    %623 = vmatpush.msra.mxu0 %v516
    %624 = vmatpush.msra.mxu0 %v514
    %625 = vmatpush.msra.mxu0 %v512
    %626 = vmatpush.msra.mxu0 %v510
    %627 = vmatpush.msra.mxu0 %v508
    %628 = vmatpush.msra.mxu0 %v506
    %629 = vmatpush.msra.mxu0 %v504
    %630 = vmatpush.msra.mxu0 %v502
    %631 = vmatpush.msra.mxu0 %v500
    %632 = vmatmul.f32.gmra.mxu0 %v463
    %v633 = vpop.f32.mrf.mxu0
    %v634 = vadd.f32 %v614, %v633
    %635 = vdwg.mxu0
    %636 = vmatpush.msra.mxu0 %v562
    %637 = vmatpush.msra.mxu0 %v560
    %638 = vmatpush.msra.mxu0 %v558
    %639 = vmatpush.msra.mxu0 %v556
    %640 = vmatpush.msra.mxu0 %v554
    %641 = vmatpush.msra.mxu0 %v552
    %642 = vmatpush.msra.mxu0 %v550
    %643 = vmatpush.msra.mxu0 %v548
    %644 = vmatpush.msra.mxu0 %v546
    %645 = vmatpush.msra.mxu0 %v544
    %646 = vmatpush.msra.mxu0 %v542
    %647 = vmatpush.msra.mxu0 %v540
    %648 = vmatpush.msra.mxu0 %v538
    %649 = vmatpush.msra.mxu0 %v536
    %650 = vmatpush.msra.mxu0 %v534
    %651 = vmatpush.msra.mxu0 %v532
    %652 = vmatmul.f32.gmra.mxu0 %v464
    %v653 = vpop.f32.mrf.mxu0
    %v654 = vadd.f32 %v634, %v653
    %655 = vdwg.mxu0
    %656 = vmatpush.msra.mxu0 %v594
    %657 = vmatpush.msra.mxu0 %v592
    %658 = vmatpush.msra.mxu0 %v590
    %659 = vmatpush.msra.mxu0 %v588
    %660 = vmatpush.msra.mxu0 %v586
    %661 = vmatpush.msra.mxu0 %v584
    %662 = vmatpush.msra.mxu0 %v582
    %663 = vmatpush.msra.mxu0 %v580
    %664 = vmatpush.msra.mxu0 %v578
    %665 = vmatpush.msra.mxu0 %v576
    %666 = vmatpush.msra.mxu0 %v574
    %667 = vmatpush.msra.mxu0 %v572
    %668 = vmatpush.msra.mxu0 %v570
    %669 = vmatpush.msra.mxu0 %v568
    %670 = vmatpush.msra.mxu0 %v566
    %671 = vmatpush.msra.mxu0 %v564
    %672 = vmatmul.f32.gmra.mxu0 %v465
    %v673 = vpop.f32.mrf.mxu0
    %v674 = vadd.f32 %v654, %v673
    %675 = vdwg.mxu0
    %676 = vmatpush.msra.mxu0 %v499
    %677 = vmatpush.msra.mxu0 %v497
    %678 = vmatpush.msra.mxu0 %v495
    %679 = vmatpush.msra.mxu0 %v493
    %680 = vmatpush.msra.mxu0 %v491
    %681 = vmatpush.msra.mxu0 %v489
    %682 = vmatpush.msra.mxu0 %v487
    %683 = vmatpush.msra.mxu0 %v485
    %684 = vmatpush.msra.mxu0 %v483
    %685 = vmatpush.msra.mxu0 %v481
    %686 = vmatpush.msra.mxu0 %v479
    %687 = vmatpush.msra.mxu0 %v477
    %688 = vmatpush.msra.mxu0 %v475
    %689 = vmatpush.msra.mxu0 %v473
    %690 = vmatpush.msra.mxu0 %v471
    %691 = vmatpush.msra.mxu0 %v469
    %692 = vmatmul.f32.gmra.mxu0 %v462
    %v693 = vpop.f32.mrf.mxu0
    %v694 = vadd.f32 0.0, %v693
    %695 = vdwg.mxu0
    %696 = vmatpush.msra.mxu0 %v531
    %697 = vmatpush.msra.mxu0 %v529
    %698 = vmatpush.msra.mxu0 %v527
    %699 = vmatpush.msra.mxu0 %v525
    %700 = vmatpush.msra.mxu0 %v523
    %701 = vmatpush.msra.mxu0 %v521
    %702 = vmatpush.msra.mxu0 %v519
    %703 = vmatpush.msra.mxu0 %v517
    %704 = vmatpush.msra.mxu0 %v515
    %705 = vmatpush.msra.mxu0 %v513
    %706 = vmatpush.msra.mxu0 %v511
    %707 = vmatpush.msra.mxu0 %v509
    %708 = vmatpush.msra.mxu0 %v507
    %709 = vmatpush.msra.mxu0 %v505
    %710 = vmatpush.msra.mxu0 %v503
    %711 = vmatpush.msra.mxu0 %v501
    %712 = vmatmul.f32.gmra.mxu0 %v463
    %v713 = vpop.f32.mrf.mxu0
    %v714 = vadd.f32 %v694, %v713
    %715 = vdwg.mxu0
    %716 = vmatpush.msra.mxu0 %v563
    %717 = vmatpush.msra.mxu0 %v561
    %718 = vmatpush.msra.mxu0 %v559
    %719 = vmatpush.msra.mxu0 %v557
    %720 = vmatpush.msra.mxu0 %v555
    %721 = vmatpush.msra.mxu0 %v553
    %722 = vmatpush.msra.mxu0 %v551
    %723 = vmatpush.msra.mxu0 %v549
    %724 = vmatpush.msra.mxu0 %v547
    %725 = vmatpush.msra.mxu0 %v545
    %726 = vmatpush.msra.mxu0 %v543
    %727 = vmatpush.msra.mxu0 %v541
    %728 = vmatpush.msra.mxu0 %v539
    %729 = vmatpush.msra.mxu0 %v537
    %730 = vmatpush.msra.mxu0 %v535
    %731 = vmatpush.msra.mxu0 %v533
    %732 = vmatmul.f32.gmra.mxu0 %v464
    %v733 = vpop.f32.mrf.mxu0
    %v734 = vadd.f32 %v714, %v733
    %735 = vdwg.mxu0
    %736 = vmatpush.msra.mxu0 %v595
    %737 = vmatpush.msra.mxu0 %v593
    %738 = vmatpush.msra.mxu0 %v591
    %739 = vmatpush.msra.mxu0 %v589
    %740 = vmatpush.msra.mxu0 %v587
    %741 = vmatpush.msra.mxu0 %v585
    %742 = vmatpush.msra.mxu0 %v583
    %743 = vmatpush.msra.mxu0 %v581
    %744 = vmatpush.msra.mxu0 %v579
    %745 = vmatpush.msra.mxu0 %v577
    %746 = vmatpush.msra.mxu0 %v575
    %747 = vmatpush.msra.mxu0 %v573
    %748 = vmatpush.msra.mxu0 %v571
    %749 = vmatpush.msra.mxu0 %v569
    %750 = vmatpush.msra.mxu0 %v567
    %751 = vmatpush.msra.mxu0 %v565
    %752 = vmatmul.f32.gmra.mxu0 %v465
    %v753 = vpop.f32.mrf.mxu0
    %v754 = vadd.f32 %v734, %v753
    %755 = vdwg.mxu0
    %v756 = vadd.f32 %v466, %v674
    %v757 = vadd.f32 %v467, %v754
    %758 = vst [vmem:[#allocation10] sm:$0xff] %v756
    %759 = vst [vmem:[#allocation10 + $0x8] sm:$0xff] %v757
    // Predicated region
    $region42: #{mlp_pallas.1} parent=1 // pred_check
      %p760 = pneg %p80
    $region43: #{mlp_pallas.1} parent=1 // pred_check_branch
      %762 = sbr.rel (%p760) target = $region45
    $region44: #{mlp_pallas.1} parent=1 // pred_region
      %v763 = vld [vmem:[#allocation10] sm:$0xff]
      %v764 = vld [vmem:[#allocation10 + $0x8] sm:$0xff]
      %v765 = vld [vmem:[%s4] sm:$0x3]
      %v767 = vperm.slane %v765, 0
      %v768 = vperm.slane %v765, 1
      %v771 = vadd.f32 %v763, %v767
      %v772 = vadd.f32 %v764, %v768
      %773 = vst [vmem:[#allocation10] sm:$0xff] %v771
      %774 = vst [vmem:[#allocation10 + $0x8] sm:$0xff] %v772
    $region45: #{mlp_pallas.1} parent=1 // pred_fallthru
      _
    // Predicated region
    $region46: #{mlp_pallas.1} parent=1 // pred_check
      _
    $region47: #{mlp_pallas.1} parent=1 // pred_check_branch
      %776 = sbr.rel (0) target = $region49
    $region48: #{mlp_pallas.1} parent=1 // pred_region
      %778 = vsyncadd [#allocation4], 0
      %s780 = sshll.u32 [#allocation10], 4
      %s781 = int_to_ptr.vmem [resolvable:$true] %s780
      %s782 = sshll.u32 %s5, 4
      %s783 = int_to_ptr.hbm [resolvable:$true] %s782
      %785 = dma.vmem_to_hbm [thread:$0]  %s781, 256, %s783, [#allocation4]
    $region49: #{mlp_pallas.1} parent=1 // pred_fallthru
      _
    // Predicated region
    $region50: #{mlp_pallas.1} parent=1 // pred_check
      _
    $region51: #{mlp_pallas.1} parent=1 // pred_check_branch
      %787 = sbr.rel (0) target = $region53
    $region52: #{mlp_pallas.1} parent=1 // pred_region
      %789 = dma.done [#allocation4], 256
    $region53: #{mlp_pallas.1} parent=1 // pred_fallthru
      _
    %790 = vsyncpa [#allocation3], 1
    %791 = vsyncpa [#allocation6], 1
    %792 = vsyncpa [#allocation9], 1
    %793 = vsyncpa [#allocation4], 1

</llo_original>
